<compile_context>
chip_gen: v5e
topology: v5e:2x2
jax: 0.10.0
libtpu: 0.0.40
codegen_flags: <defaults>
</compile_context>

<pallas_src>
import math

import jax
import jax.numpy as jnp
from jax.experimental import pallas as pl
from jax.experimental.pallas import tpu as pltpu


def _pos_enc_add_kernel(x_ref, pe_ref, o_ref):
    # x_ref / o_ref: (Bt, TS, D); pe_ref: (1, TS, D).
    # Leading-dim broadcast only (no cross-lane movement) -> plain VPU add.
    o_ref[...] = (x_ref[...] + pe_ref[...]).astype(o_ref.dtype)


def make_positional_encoding_table(d_model: int, max_len: int = 5000,
                                   dtype=jnp.float32) -> jnp.ndarray:
    """PE table identical to the PyTorch __init__ (math in f32).
    Build it ONCE in the model dtype so the forward needs no per-call cast."""
    position = jnp.arange(0, max_len, dtype=jnp.float32)[:, None]                 # (max_len, 1)
    div_term = jnp.exp(
        jnp.arange(0, d_model, 2, dtype=jnp.float32) * (-math.log(10000.0) / d_model)
    )                                                                              # (ceil(D/2),)
    angles = position * div_term                                                   # (max_len, ceil(D/2))
    pe = jnp.zeros((max_len, d_model), dtype=jnp.float32)
    pe = pe.at[:, 0::2].set(jnp.sin(angles))
    pe = pe.at[:, 1::2].set(jnp.cos(angles)[:, : d_model // 2])
    return pe[None, :, :].astype(dtype)                                            # (1, max_len, D)


def _round_down(x: int, m: int) -> int:
    return (x // m) * m


def _largest_divisor_leq(n: int, cap: int) -> int:
    cap = max(1, min(n, cap))
    for d in range(cap, 0, -1):
        if n % d == 0:
            return d
    return 1


def _choose_tiles(B: int, S: int, D: int, itemsize: int,
                  target_bytes: int = 3 << 20) -> tuple[int, int]:
    """Pick (Bt, TS).  TS is a multiple of the dtype's sublane pack, capped so one
    x/out block is ~target_bytes (never the full S for huge S).  If the S axis
    alone can't reach the target, grow the batch block (fewer grid steps, same
    total bytes).  Assumes S >= 8 (wrapper falls back to pure JAX otherwise)."""
    sub = {4: 8, 2: 16, 1: 32}.get(itemsize, 8)
    step = sub if S >= sub else 8
    row_bytes = D * itemsize
    max_rows = max(step, _round_down(max(step, target_bytes // max(1, row_bytes)), step))
    TS = max(step, min(_round_down(S, step), max_rows))
    bt_cap = max(1, target_bytes // max(1, TS * row_bytes))
    Bt = _largest_divisor_leq(B, bt_cap)        # divisor of B -> no partial batch blocks
    return Bt, TS


def positional_encoding_forward(x: jnp.ndarray, pe: jnp.ndarray) -> jnp.ndarray:
    """x: (B, S, D); pe: (1, max_len, D) table (pre-built in x.dtype).
    Returns x + pe[:, :S] in x.dtype."""
    B, S, D = x.shape
    assert pe.ndim == 3 and pe.shape[0] == 1 and pe.shape[2] == D
    assert pe.shape[1] >= S, "max_len must cover the sequence length"

    if pe.dtype != x.dtype:
        # Dtype glue only if the caller didn't pre-build the table in the model
        # dtype (prefer make_positional_encoding_table(dtype=x.dtype) at init).
        pe = pe.astype(x.dtype)

    if S < 8:
        # Degenerate tiny sequence: tiling constraints don't pay off; pure JAX.
        return x + pe[:, :S, :]

    itemsize = jnp.dtype(x.dtype).itemsize
    Bt, TS = _choose_tiles(B, S, D, itemsize)
    grid = (pl.cdiv(S, TS), B // Bt)            # s outer, b inner -> pe reused across b

    x_block_bytes = Bt * TS * D * itemsize
    pe_block_bytes = TS * D * itemsize
    # 2 pipeline buffers for each of {x, pe, out} + headroom; well under every
    # generation's scoped VMEM (v5e/v6e/v7x).
    vmem_limit = min(64 << 20, 2 * (2 * x_block_bytes + pe_block_bytes) + (2 << 20))

    return pl.pallas_call(
        _pos_enc_add_kernel,
        out_shape=jax.ShapeDtypeStruct((B, S, D), x.dtype),
        grid_spec=pltpu.PrefetchScalarGridSpec(
            num_scalar_prefetch=0,
            grid=grid,
            in_specs=[
                # x: one (Bt, TS, D) tile per (s, b) grid point.
                pl.BlockSpec((Bt, TS, D), lambda s, b: (b, s, 0)),
                # pe: full table passed in; index_map depends only on s, so each
                # (1, TS, D) tile is DMA'd once and stays resident across the
                # inner batch loop (pe HBM traffic = S*D, not B*S*D).
                pl.BlockSpec((1, TS, D), lambda s, b: (0, s, 0)),
            ],
            out_specs=pl.BlockSpec((Bt, TS, D), lambda s, b: (b, s, 0)),
        ),
        # TODO(synk): re-add input_output_aliases={0: 0} only for callers that jit
        # with donate_argnums on x (saves one (B,S,D) HBM allocation); without
        # donation XLA would insert a defensive full copy instead.
        compiler_params=pltpu.CompilerParams(
            # s parallel: v7x megacore splits on the sequence axis, preserving the
            # once-per-s-tile pe DMA per core; b is the inner sequential loop.
            dimension_semantics=("parallel", "arbitrary"),
            vmem_limit_bytes=vmem_limit,
        ),
    )(x, pe)


if __name__ == "__main__":
    # Small shapes consistent with the (B, S, d_model) module input; D kept a
    # multiple of 128 (lane-dense stores), matching the module's real d_model=2048.
    B, S, D = 2, 16, 256
    max_len = 64  # >= S; module default is 5000 but a small table suffices here

    key = jax.random.PRNGKey(0)
    x = jax.random.normal(key, (B, S, D), dtype=jnp.float32)

    # Table built once, already in the model dtype (no per-forward cast/slice pass).
    pe = make_positional_encoding_table(D, max_len, dtype=x.dtype)

    out = jax.block_until_ready(positional_encoding_forward(x, pe))
    ref = x + pe[:, :S]

    assert out.shape == (B, S, D)
    assert jnp.allclose(out, ref, atol=1e-6), "mismatch vs reference"

    print("KERNEL_OK")
</pallas_src>

<mosaic_0001>
module attributes {stable_mosaic.version = 11 : i64} {
  func.func @_pos_enc_add_kernel(%arg0: i32, %arg1: i32, %arg2: memref<2x16x256xf32, #tpu.memory_space<vmem>>, %arg3: memref<1x16x256xf32, #tpu.memory_space<vmem>>, %arg4: memref<2x16x256xf32, #tpu.memory_space<vmem>>) attributes {dimension_semantics = [#tpu.dimension_semantics<parallel>, #tpu.dimension_semantics<arbitrary>], iteration_bounds = array<i64: 1, 1>, scalar_prefetch = 0 : i64, scratch_operands = 0 : i64, tpu.core_type = #tpu.core_type<tc>, window_params = [{transform_indices = @transform_0, window_bounds = array<i64: 2, 16, 256>}, {transform_indices = @transform_1, window_bounds = array<i64: 1, 16, 256>}, {transform_indices = @transform_2, window_bounds = array<i64: 2, 16, 256>}]} {
    %c0 = arith.constant 0 : index
    %c0_0 = arith.constant 0 : index
    %c0_1 = arith.constant 0 : index
    %0 = vector.load %arg2[%c0, %c0_0, %c0_1] : memref<2x16x256xf32, #tpu.memory_space<vmem>>, vector<2x16x256xf32>
    %c0_2 = arith.constant 0 : index
    %c0_3 = arith.constant 0 : index
    %c0_4 = arith.constant 0 : index
    %1 = vector.load %arg3[%c0_2, %c0_3, %c0_4] : memref<1x16x256xf32, #tpu.memory_space<vmem>>, vector<1x16x256xf32>
    %2 = vector.broadcast %1 : vector<1x16x256xf32> to vector<2x16x256xf32>
    %3 = arith.addf %0, %2 : vector<2x16x256xf32>
    %c0_5 = arith.constant 0 : index
    %c0_6 = arith.constant 0 : index
    %c0_7 = arith.constant 0 : index
    %4 = vector.load %arg4[%c0_5, %c0_6, %c0_7] : memref<2x16x256xf32, #tpu.memory_space<vmem>>, vector<2x16x256xf32>
    tpu.vector_store %arg4[%c0_5, %c0_6, %c0_7], %3 {strides = array<i32>} : memref<2x16x256xf32, #tpu.memory_space<vmem>>, vector<2x16x256xf32>,
    return
  }
  func.func @transform_0(%arg0: i32, %arg1: i32) -> (i32, i32, i32) {
    %c0_i32 = arith.constant 0 : i32
    %c0_i32_0 = arith.constant 0 : i32
    return %arg1, %arg0, %c0_i32 : i32, i32, i32
  }
  func.func @transform_1(%arg0: i32, %arg1: i32) -> (i32, i32, i32) {
    %c0_i32 = arith.constant 0 : i32
    %c0_i32_0 = arith.constant 0 : i32
    %c0_i32_1 = arith.constant 0 : i32
    return %c0_i32, %arg0, %c0_i32_0 : i32, i32, i32
  }
  func.func @transform_2(%arg0: i32, %arg1: i32) -> (i32, i32, i32) {
    %c0_i32 = arith.constant 0 : i32
    %c0_i32_0 = arith.constant 0 : i32
    return %arg1, %arg0, %c0_i32 : i32, i32, i32
  }
}

</mosaic_0001>

<llo_original>
// kernel: tpu_custom_call.1
$region0: #{tpu_custom_call.1}
  #allocation0 [shape = 'u32[]', space=smem, size = 0x4, offset = 0x4, fixed_abs, tag = 'smem constant byte address 0x4 - core index']
  #allocation1 [shape = 'u32[72,128]{1,0:T(1,128)}', space=vmem, size = 0x9000, scoped, tag = 'internal scratch']
  %s0 = inlined_call_operand.hbm [shape: f32[2,16,256], index: 0, kind: input, shape index: {}]
  %s1 = inlined_call_operand.hbm [shape: f32[1,64,256], index: 1, kind: input, shape index: {}]
  %s2 = inlined_call_operand.hbm [shape: f32[2,16,256], index: 2, kind: output, shape index: {}]
  %s3 = sld [smem:[#allocation0]]
  $region26: #{tpu_custom_call.1} parent=0
    _
  %s5 = ssub.s32 1, %s3
  %s6 = scalar_select 0, %s5, %s3
  $region1: #{tpu_custom_call.1} parent=0
    #allocation2 [shape = 'u8[32768]{0}', space=vmem, size = 0x8000, scoped, tag = 'input window, operand 0, single buffered']
    #allocation3 [shape = 's32[1]{0}', space=sflag, size = 0x4, scoped, tag = 'scoped memory for tpu_custom_call.1']
    #allocation4 [shape = 's32[1]{0}', space=sflag, size = 0x4, scoped, tag = 'scoped memory for tpu_custom_call.1']
    #allocation5 [shape = 'u8[16384]{0}', space=vmem, size = 0x4000, scoped, tag = 'input window, operand 1, single buffered']
    #allocation6 [shape = 's32[1]{0}', space=sflag, size = 0x4, scoped, tag = 'scoped memory for tpu_custom_call.1']
    #allocation7 [shape = 'u8[32768]{0}', space=vmem, size = 0x8000, scoped, tag = 'output window, operand 0, single buffered']
    %7 = vsyncpa [#allocation3], 0
    %8 = vsyncpa [#allocation6], 0
    %9 = vsyncpa [#allocation4], 0
    // Predicated region
    $region2: #{tpu_custom_call.1} parent=1 // pred_check
      _
    $region3: #{tpu_custom_call.1} parent=1 // pred_check_branch
      %11 = sbr.rel (0) target = $region5
    $region4: #{tpu_custom_call.1} parent=1 // pred_region
      %13 = vsyncadd [#allocation3], 0
      %s14 = sshll.u32 %s0, 4
      %s15 = int_to_ptr.hbm [resolvable:$true] %s14
      %s16 = sshll.u32 [#allocation2], 4
      %s17 = int_to_ptr.vmem [resolvable:$true] %s16
      %22 = dma.hbm_to_vmem [thread:$0]  %s15, 1024, %s17, [#allocation3], 256, 256, 16
    $region5: #{tpu_custom_call.1} parent=1 // pred_fallthru
      _
    // Predicated region
    $region6: #{tpu_custom_call.1} parent=1 // pred_check
      _
    $region7: #{tpu_custom_call.1} parent=1 // pred_check_branch
      %24 = sbr.rel (0) target = $region9
    $region8: #{tpu_custom_call.1} parent=1 // pred_region
      %26 = vsyncadd [#allocation6], 0
      %s27 = sshll.u32 %s1, 4
      %s28 = int_to_ptr.hbm [resolvable:$true] %s27
      %s29 = sshll.u32 [#allocation5], 4
      %s30 = int_to_ptr.vmem [resolvable:$true] %s29
      %35 = dma.hbm_to_vmem [thread:$0]  %s28, 512, %s30, [#allocation6], 256, 256, 16
    $region9: #{tpu_custom_call.1} parent=1 // pred_fallthru
      _
    // Predicated region
    $region10: #{tpu_custom_call.1} parent=1 // pred_check
      _
    $region11: #{tpu_custom_call.1} parent=1 // pred_check_branch
      %37 = sbr.rel (0) target = $region13
    $region12: #{tpu_custom_call.1} parent=1 // pred_region
      %39 = dma.done [#allocation3], 1024
    $region13: #{tpu_custom_call.1} parent=1 // pred_fallthru
      _
    // Predicated region
    $region14: #{tpu_custom_call.1} parent=1 // pred_check
      _
    $region15: #{tpu_custom_call.1} parent=1 // pred_check_branch
      %41 = sbr.rel (0) target = $region17
    $region16: #{tpu_custom_call.1} parent=1 // pred_region
      %43 = dma.done [#allocation6], 512
    $region17: #{tpu_custom_call.1} parent=1 // pred_fallthru
      _
    %v44 = vld [vmem:[#allocation2] sm:$0xff]
    %v45 = vld [vmem:[#allocation2 + $0x8] sm:$0xff]
    %v46 = vld [vmem:[#allocation2 + $0x10] sm:$0xff]
    %v47 = vld [vmem:[#allocation2 + $0x18] sm:$0xff]
    %v48 = vld [vmem:[#allocation2 + $0x20] sm:$0xff]
    %v49 = vld [vmem:[#allocation2 + $0x28] sm:$0xff]
    %v50 = vld [vmem:[#allocation2 + $0x30] sm:$0xff]
    %v51 = vld [vmem:[#allocation2 + $0x38] sm:$0xff]
    %v52 = vld [vmem:[#allocation5] sm:$0xff]
    %v53 = vld [vmem:[#allocation5 + $0x8] sm:$0xff]
    %v54 = vld [vmem:[#allocation5 + $0x10] sm:$0xff]
    %v55 = vld [vmem:[#allocation5 + $0x18] sm:$0xff]
    %v56 = vadd.f32 %v44, %v52
    %v57 = vadd.f32 %v45, %v53
    %v58 = vadd.f32 %v46, %v54
    %v59 = vadd.f32 %v47, %v55
    %v60 = vadd.f32 %v48, %v52
    %v61 = vadd.f32 %v49, %v53
    %v62 = vadd.f32 %v50, %v54
    %v63 = vadd.f32 %v51, %v55
    %64 = vst [vmem:[#allocation7] sm:$0xff] %v56
    %65 = vst [vmem:[#allocation7 + $0x8] sm:$0xff] %v57
    %66 = vst [vmem:[#allocation7 + $0x10] sm:$0xff] %v58
    %67 = vst [vmem:[#allocation7 + $0x18] sm:$0xff] %v59
    %68 = vst [vmem:[#allocation7 + $0x20] sm:$0xff] %v60
    %69 = vst [vmem:[#allocation7 + $0x28] sm:$0xff] %v61
    %70 = vst [vmem:[#allocation7 + $0x30] sm:$0xff] %v62
    %71 = vst [vmem:[#allocation7 + $0x38] sm:$0xff] %v63
    // Predicated region
    $region18: #{tpu_custom_call.1} parent=1 // pred_check
      _
    $region19: #{tpu_custom_call.1} parent=1 // pred_check_branch
      %73 = sbr.rel (0) target = $region21
    $region20: #{tpu_custom_call.1} parent=1 // pred_region
      %75 = vsyncadd [#allocation4], 0
      %s76 = sshll.u32 [#allocation7], 4
      %s77 = int_to_ptr.vmem [resolvable:$true] %s76
      %s78 = sshll.u32 %s2, 4
      %s79 = int_to_ptr.hbm [resolvable:$true] %s78
      %84 = dma.vmem_to_hbm [thread:$0]  %s77, 1024, %s79, [#allocation4], 256, 256, 16
    $region21: #{tpu_custom_call.1} parent=1 // pred_fallthru
      _
    // Predicated region
    $region22: #{tpu_custom_call.1} parent=1 // pred_check
      _
    $region23: #{tpu_custom_call.1} parent=1 // pred_check_branch
      %86 = sbr.rel (0) target = $region25
    $region24: #{tpu_custom_call.1} parent=1 // pred_region
      %88 = dma.done [#allocation4], 1024
    $region25: #{tpu_custom_call.1} parent=1 // pred_fallthru
      _
    %89 = vsyncpa [#allocation3], 1
    %90 = vsyncpa [#allocation6], 1
    %91 = vsyncpa [#allocation4], 1

</llo_original>
